<compile_context>
chip_gen: v6e
topology: v6e:2x2x1
jax: 0.10.0
libtpu: 0.0.40
codegen_flags: <defaults>
</compile_context>

<pallas_src>
import functools
import math

import jax
import jax.numpy as jnp
from jax.experimental import pallas as pl
from jax.experimental.pallas import tpu as pltpu

_SUBLANE = 8
_LANE = 128


# ----------------------------- kernels ------------------------------------ #

def _posenc_kernel(x_ref, pe_ref, o_ref):
    # x_ref: (ts*B, 1), pe_ref: (ts, D), o_ref: (ts*B, D)
    ts, d = pe_ref.shape
    b = x_ref.shape[0] // ts
    pe_rep = jnp.broadcast_to(pe_ref[...][:, None, :], (ts, b, d)).reshape(ts * b, d)
    y = x_ref[...] + pe_rep                       # (ts*B,1) + (ts*B,D): lane splat
    o_ref[...] = y.astype(o_ref.dtype)


def _posenc_dropout_kernel(seed_ref, x_ref, pe_ref, o_ref, *, keep_prob, scale):
    # Training-mode (inverted) dropout with the on-chip PRNG.  Seed and tile id
    # are passed as two seed words, so a caller incrementing `seed` per step
    # cannot alias another tile's stream.
    ts, d = pe_ref.shape
    b = x_ref.shape[0] // ts
    pltpu.prng_seed(seed_ref[0], pl.program_id(0))
    pe_rep = jnp.broadcast_to(pe_ref[...][:, None, :], (ts, b, d)).reshape(ts * b, d)
    y = x_ref[...] + pe_rep
    bits = pltpu.prng_random_bits(y.shape)
    if bits.dtype != jnp.uint32:                  # trace-time check; no-op if already u32
        bits = pltpu.bitcast(bits, jnp.uint32)
    # Clamp so keep_prob ~= 1.0 cannot wrap the uint32 threshold to 0.
    thresh = jnp.uint32(min(int(keep_prob * 4294967296.0), 0xFFFFFFFF))
    keep = bits < thresh
    # TODO(synk): if v7x profiling shows this path PRNG/VPU-bound, draw one
    # uint32 per 4 elements and compare 8-bit sub-fields (4x fewer draws).
    o_ref[...] = jnp.where(keep, y * scale, jnp.zeros_like(y)).astype(o_ref.dtype)


# ----------------------------- glue / setup -------------------------------- #

def make_pe(max_len, d_model):
    """Sinusoidal table; same math as the torch __init__ (dense (L, D))."""
    position = jnp.arange(max_len, dtype=jnp.float32)[:, None]            # (L, 1)
    div_term = jnp.exp(jnp.arange(0, d_model, 2, dtype=jnp.float32)
                       * (-math.log(10000.0) / d_model))                  # (D/2,)
    pe = jnp.zeros((max_len, d_model), jnp.float32)
    pe = pe.at[:, 0::2].set(jnp.sin(position * div_term))
    pe = pe.at[:, 1::2].set(jnp.cos(position * div_term))
    return pe                                                             # (L, D)


def _vmem_budget_and_limit():
    """Per-generation VMEM budget for pipelined blocks + a matching scoped
    limit.  Falls back to a conservative 10 MiB / default limit when the TPU
    cannot be queried (e.g. CPU/interpret mode)."""
    try:
        cap = int(pltpu.get_tpu_info().vmem_capacity_bytes)
    except Exception:
        return 10 << 20, None
    budget = min(cap // 4, 24 << 20)              # v7x (64 MiB) -> 16 MiB, v5e/v6e -> 24 MiB
    limit = min(cap - (8 << 20), budget + (8 << 20))
    return budget, limit


def _pick_seq_tile(S, B, D, out_itemsize, *, training, vmem_budget, min_steps=4):
    """Largest sequence tile whose double-buffered blocks (plus the training
    path's temporaries) fit the budget, capped so the grid keeps >= min_steps
    steps (pipelining on all gens; both TensorCores on v7x)."""
    d_pad = -(-D // _LANE) * _LANE
    per_row = 2 * (B * d_pad * out_itemsize       # out block (double buffered)
                   + B * _LANE * 4                # x block (ts*B, 1), lane-padded
                   + d_pad * 4)                   # pe block
    if training:
        per_row += 3 * B * d_pad * 4              # y, random bits, keep mask
    ts = max(_SUBLANE, vmem_budget // per_row)
    cap = -(-S // min_steps)                      # cdiv(S, min_steps)
    cap = -(-cap // _SUBLANE) * _SUBLANE          # round up to a sublane multiple
    ts = min(ts, max(_SUBLANE, cap))
    ts = max(_SUBLANE, (ts // _SUBLANE) * _SUBLANE)
    return int(ts)


def positional_encoding(x, pe, *, p=0.1, training=False, seed=0,
                        out_dtype=None, ts=None):
    """x: (S, B), pe: (max_len, D) -> (S, B, D) = dropout(x[:,:,None] + pe[:S][:,None,:])."""
    S, B = x.shape
    L, D = pe.shape
    assert S <= L, "sequence length exceeds max_len of the pe table"

    out_dtype = x.dtype if out_dtype is None else jnp.dtype(out_dtype)
    apply_dropout = bool(training) and p > 0.0

    vmem_budget, vmem_limit = _vmem_budget_and_limit()
    if ts is None:
        ts = _pick_seq_tile(S, B, D, jnp.dtype(out_dtype).itemsize,
                            training=apply_dropout, vmem_budget=vmem_budget)
    ts = int(min(ts, S))
    assert ts == S or ts % _SUBLANE == 0, "ts must be a multiple of 8 (or equal S)"

    # Single-block + unaligned S: pass pe pre-sliced so its block equals the
    # full array (satisfies the (8,128) rule); otherwise window the full table.
    pe_in = pe[:S] if (ts == S and S % _SUBLANE != 0) else pe

    x_flat = x.reshape(S * B, 1)                  # free; makes the D-broadcast a lane splat
    grid = (pl.cdiv(S, ts),)
    out_shape = jax.ShapeDtypeStruct((S * B, D), out_dtype)   # lane-dense 2-D output
    cparams = pltpu.CompilerParams(
        dimension_semantics=("parallel",),
        vmem_limit_bytes=vmem_limit,
    )

    if not apply_dropout:
        # Eval mode: dropout is the identity (matches the torch module in .eval()).
        out_flat = pl.pallas_call(
            _posenc_kernel,
            out_shape=out_shape,
            grid_spec=pltpu.PrefetchScalarGridSpec(
                num_scalar_prefetch=0,
                grid=grid,
                in_specs=[
                    pl.BlockSpec((ts * B, 1), lambda i: (i, 0)),
                    pl.BlockSpec((ts, D), lambda i: (i, 0)),      # windows pe[:S] for free
                ],
                out_specs=pl.BlockSpec((ts * B, D), lambda i: (i, 0)),
            ),
            compiler_params=cparams,
        )(x_flat, pe_in)
        return out_flat.reshape(S, B, D)

    # Training path: inverted dropout inside the kernel (TPU on-chip PRNG).
    keep_prob = 1.0 - float(p)
    scale = (1.0 / keep_prob) if keep_prob > 0.0 else 0.0     # p == 1.0 -> drop all, no inf
    kernel = functools.partial(_posenc_dropout_kernel, keep_prob=keep_prob, scale=scale)
    seed_arr = jnp.asarray([seed], dtype=jnp.int32)
    out_flat = pl.pallas_call(
        kernel,
        out_shape=out_shape,
        grid_spec=pltpu.PrefetchScalarGridSpec(
            num_scalar_prefetch=1,                 # seed lands in SMEM
            grid=grid,
            in_specs=[
                pl.BlockSpec((ts * B, 1), lambda i, seed_ref: (i, 0)),
                pl.BlockSpec((ts, D), lambda i, seed_ref: (i, 0)),
            ],
            out_specs=pl.BlockSpec((ts * B, D), lambda i, seed_ref: (i, 0)),
        ),
        compiler_params=cparams,
    )(seed_arr, x_flat, pe_in)
    return out_flat.reshape(S, B, D)


# ----------------------------- demo ---------------------------------------- #

if __name__ == "__main__":
    d_model = 128          # lane-dense output (multiple of 128)
    max_len = 512
    S, B = 32, 8
    p = 0.25

    key = jax.random.PRNGKey(0)
    x = jax.random.normal(key, (S, B), dtype=jnp.float32)
    pe = make_pe(max_len, d_model)

    # Pure-JAX reference of the torch forward (eval mode).
    ref = x[:, :, None] + pe[:S][:, None, :]

    # Eval mode, explicit ts=8 -> 4 pipelined grid steps.
    out = jax.block_until_ready(positional_encoding(x, pe, p=p, training=False, ts=8))
    assert out.shape == (S, B, d_model)
    assert jnp.allclose(out, ref, atol=1e-6), "eval-mode mismatch vs reference"

    # Eval mode with the auto-picked tile (capped to keep >= 4 grid steps).
    out2 = jax.block_until_ready(positional_encoding(x, pe, p=p, training=False))
    assert jnp.allclose(out2, ref, atol=1e-6), "auto-tile mismatch vs reference"

    # bf16-store fast path (math stays f32; flattened lane-dense stores).
    out_bf16 = jax.block_until_ready(
        positional_encoding(x, pe, p=p, training=False, out_dtype=jnp.bfloat16))
    assert jnp.allclose(out_bf16.astype(jnp.float32), ref, atol=2e-2, rtol=2e-2), \
        "bf16-store mismatch vs reference"

    # Training mode uses the TPU on-chip PRNG, which has no CPU/interpret
    # lowering -- exercise it only when the default backend is a real TPU.
    if jax.default_backend() == "tpu":
        out_tr = jax.block_until_ready(
            positional_encoding(x, pe, p=p, training=True, seed=42, ts=8))
        scaled = ref / (1.0 - p)
        structural = jnp.all(
            (out_tr == 0.0)
            | (jnp.abs(out_tr - scaled) <= 1e-4 + 1e-4 * jnp.abs(scaled)))
        assert bool(structural), "training-mode output is not {0, scaled-ref} structured"
        drop_frac = float(jnp.mean((out_tr == 0.0).astype(jnp.float32)))
        assert 0.05 < drop_frac < 0.6, f"dropout fraction {drop_frac} implausible for p={p}"

    print("KERNEL_OK")
</pallas_src>

<mosaic_0001>
module attributes {stable_mosaic.version = 11 : i64} {
  func.func @_posenc_kernel(%arg0: i32, %arg1: memref<64x1xf32, #tpu.memory_space<vmem>>, %arg2: memref<8x128xf32, #tpu.memory_space<vmem>>, %arg3: memref<64x128xf32, #tpu.memory_space<vmem>>) attributes {dimension_semantics = [#tpu.dimension_semantics<parallel>], iteration_bounds = array<i64: 4>, scalar_prefetch = 0 : i64, scratch_operands = 0 : i64, tpu.core_type = #tpu.core_type<tc>, window_params = [{transform_indices = @transform_0, window_bounds = array<i64: 64, 1>}, {transform_indices = @transform_1, window_bounds = array<i64: 8, 128>}, {transform_indices = @transform_2, window_bounds = array<i64: 64, 128>}]} {
    %c0 = arith.constant 0 : index
    %c0_0 = arith.constant 0 : index
    %0 = vector.load %arg2[%c0, %c0_0] : memref<8x128xf32, #tpu.memory_space<vmem>>, vector<8x128xf32>
    %1 = vector.shape_cast %0 : vector<8x128xf32> to vector<8x1x128xf32>
    %2 = vector.shape_cast %1 : vector<8x1x128xf32> to vector<8x1x128xf32>
    %3 = vector.broadcast %2 : vector<8x1x128xf32> to vector<8x8x128xf32>
    %4 = vector.shape_cast %3 : vector<8x8x128xf32> to vector<64x128xf32>
    %c0_1 = arith.constant 0 : index
    %c0_2 = arith.constant 0 : index
    %5 = vector.load %arg1[%c0_1, %c0_2] : memref<64x1xf32, #tpu.memory_space<vmem>>, vector<64x1xf32>
    %6 = vector.broadcast %5 : vector<64x1xf32> to vector<64x128xf32>
    %7 = arith.addf %6, %4 : vector<64x128xf32>
    %c0_3 = arith.constant 0 : index
    %c0_4 = arith.constant 0 : index
    %8 = vector.load %arg3[%c0_3, %c0_4] : memref<64x128xf32, #tpu.memory_space<vmem>>, vector<64x128xf32>
    tpu.vector_store %arg3[%c0_3, %c0_4], %7 {strides = array<i32>} : memref<64x128xf32, #tpu.memory_space<vmem>>, vector<64x128xf32>,
    return
  }
  func.func @transform_0(%arg0: i32) -> (i32, i32) {
    %c0_i32 = arith.constant 0 : i32
    %c0_i32_0 = arith.constant 0 : i32
    return %arg0, %c0_i32 : i32, i32
  }
  func.func @transform_1(%arg0: i32) -> (i32, i32) {
    %c0_i32 = arith.constant 0 : i32
    %c0_i32_0 = arith.constant 0 : i32
    return %arg0, %c0_i32 : i32, i32
  }
  func.func @transform_2(%arg0: i32) -> (i32, i32) {
    %c0_i32 = arith.constant 0 : i32
    %c0_i32_0 = arith.constant 0 : i32
    return %arg0, %c0_i32 : i32, i32
  }
}

</mosaic_0001>

<llo_original>
// kernel: tpu_custom_call.1
$region0: #{tpu_custom_call.1}
  #allocation0 [shape = 'u32[]', space=smem, size = 0x4, offset = 0x4, fixed_abs, tag = 'smem constant byte address 0x4 - core index']
  #allocation1 [shape = 'u32[144,128]{1,0:T(1,128)}', space=vmem, size = 0x12000, scoped, tag = 'internal scratch']
  %s0 = inlined_call_operand.vmem [shape: f32[256,1], index: 0, kind: input, shape index: {}]
  %s1 = inlined_call_operand.hbm [shape: f32[512,128], index: 1, kind: input, shape index: {}]
  %s2 = inlined_call_operand.hbm [shape: f32[256,128], index: 2, kind: output, shape index: {}]
  %s3 = sld [smem:[#allocation0]]
  $region45: #{tpu_custom_call.1} parent=0
    _
  %s5 = ssub.s32 1, %s3
  %s6 = scalar_select 0, %s5, %s3
  $region1: #{tpu_custom_call.1} parent=0
    #allocation2 [shape = 'u8[8192]{0}', space=vmem, size = 0x2000, scoped, tag = 'input window, operand 1']
    #allocation3 [shape = 's32[2]{0}', space=sflag, size = 0x8, scoped, tag = 'scoped memory for tpu_custom_call.1']
    #allocation4 [shape = 's32[2]{0}', space=sflag, size = 0x8, scoped, tag = 'scoped memory for tpu_custom_call.1']
    #allocation5 [shape = 'u8[65536]{0}', space=vmem, size = 0x10000, scoped, tag = 'output window, operand 0']
    %7 = vsyncpa [#allocation3], 0
    %s8 = scalar_lea.sflag [#allocation3], 1
    %9 = vsyncpa %s8, 0
    %10 = vsyncpa [#allocation4], 0
    %s11 = scalar_lea.sflag [#allocation4], 1
    %12 = vsyncpa %s11, 0
    loop: start=0, step=1, limit=6
    $region2: #{tpu_custom_call.1} parent=1 // loop_pre_header
      _
    $region3: #{tpu_custom_call.1} parent=1 // loop_header
      %s14 = sphi 0, %s18
      %p15 = scmp.ge.s32.totalorder %s14, 6
      %s24 = sphi 0, %s26
      %s27 = sphi 0, %s24
      %s28 = sphi 0, %s27
      %s44 = sphi 0, %s28
      %s50 = sphi 0, %s52
      %s53 = sphi 0, %s50
      %s54 = sphi 0, %s53
      %s70 = sphi 0, %s54
      %s76 = sphi 0, %s78
      %s79 = sphi 0, %s76
      %s80 = sphi 0, %s79
      %s96 = sphi 0, %s80
    $region4: #{tpu_custom_call.1} parent=1 // loop_header_branch
      %17 = sbr.rel (%p15) target = $region8
    $region5: #{tpu_custom_call.1} parent=1 // loop_body
      %s19 = ssub.s32 %s14, 1
      %s20 = ssub.s32 %s14, 2
      %s21 = sadd.s32 %s14, 1
      %s22 = ssub.s32 %s14, %s21
      %p23 = scmp.eq.s32.totalorder %s22, 0
      %s25 = sadd.s32 %s24, 1
      %s26 = scalar_select %p23, %s24, %s25
      %p29 = pneg %p23
      %p30 = scmp.eq.s32.totalorder %s14, 3
      %p31 = por %p29, %p30
      %p32 = scmp.ne.s32.totalorder %s24, %s27
      %p33 = scmp.eq.s32.totalorder %s14, 0
      %p34 = por %p32, %p33
      %p35 = scmp.ne.s32.totalorder %s24, %s27
      %p36 = scmp.eq.s32.totalorder %s19, 3
      %p37 = por %p35, %p36
      %p38 = scmp.ne.s32.totalorder %s27, %s28
      %p39 = scmp.eq.s32.totalorder %s19, 0
      %p40 = por %p38, %p39
      %p41 = scmp.ne.s32.totalorder %s27, %s28
      %p42 = scmp.eq.s32.totalorder %s20, 3
      %p43 = por %p41, %p42
      %p45 = scmp.ne.s32.totalorder %s28, %s44
      %p46 = scmp.eq.s32.totalorder %s20, 0
      %p47 = por %p45, %p46
      %s48 = ssub.s32 %s14, %s21
      %p49 = scmp.eq.s32.totalorder %s48, 0
      %s51 = sadd.s32 %s50, 1
      %s52 = scalar_select %p49, %s50, %s51
      %p55 = pneg %p49
      %p56 = scmp.eq.s32.totalorder %s14, 3
      %p57 = por %p55, %p56
      %p58 = scmp.ne.s32.totalorder %s50, %s53
      %p59 = scmp.eq.s32.totalorder %s14, 0
      %p60 = por %p58, %p59
      %p61 = scmp.ne.s32.totalorder %s50, %s53
      %p62 = scmp.eq.s32.totalorder %s19, 3
      %p63 = por %p61, %p62
      %p64 = scmp.ne.s32.totalorder %s53, %s54
      %p65 = scmp.eq.s32.totalorder %s19, 0
      %p66 = por %p64, %p65
      %p67 = scmp.ne.s32.totalorder %s53, %s54
      %p68 = scmp.eq.s32.totalorder %s20, 3
      %p69 = por %p67, %p68
      %p71 = scmp.ne.s32.totalorder %s54, %s70
      %p72 = scmp.eq.s32.totalorder %s20, 0
      %p73 = por %p71, %p72
      %s74 = ssub.s32 %s14, %s21
      %p75 = scmp.eq.s32.totalorder %s74, 0
      %s77 = sadd.s32 %s76, 1
      %s78 = scalar_select %p75, %s76, %s77
      %p81 = pneg %p75
      %p82 = scmp.eq.s32.totalorder %s14, 3
      %p83 = por %p81, %p82
      %p84 = scmp.ne.s32.totalorder %s76, %s79
      %p85 = scmp.eq.s32.totalorder %s14, 0
      %p86 = por %p84, %p85
      %p87 = scmp.ne.s32.totalorder %s76, %s79
      %p88 = scmp.eq.s32.totalorder %s19, 3
      %p89 = por %p87, %p88
      %p90 = scmp.ne.s32.totalorder %s79, %s80
      %p91 = scmp.eq.s32.totalorder %s19, 0
      %p92 = por %p90, %p91
      %p93 = scmp.ne.s32.totalorder %s79, %s80
      %p94 = scmp.eq.s32.totalorder %s20, 3
      %p95 = por %p93, %p94
      %p97 = scmp.ne.s32.totalorder %s80, %s96
      %p98 = scmp.eq.s32.totalorder %s20, 0
      %p99 = por %p97, %p98
      %p100 = scmp.le.s32.totalorder 1, %s14
      %p101 = scmp.lt.s32.totalorder %s14, 5
      %p102 = pnand %p100, %p101
      %p103 = pneg %p102
      // Predicated region
      $region9: #{tpu_custom_call.1} parent=5 // pred_check
        _
      $region10: #{tpu_custom_call.1} parent=5 // pred_check_branch
        %105 = sbr.rel (%p102) target = $region12
      $region11: #{tpu_custom_call.1} parent=5 // pred_region
        %s106 = ssub.s32 %s14, 1
      $region12: #{tpu_custom_call.1} parent=5 // pred_fallthru
        _
      %p107 = scmp.lt.s32.totalorder %s14, 4
      // Predicated region
      $region13: #{tpu_custom_call.1} parent=5 // pred_check
        %p108 = pneg %p107
      $region14: #{tpu_custom_call.1} parent=5 // pred_check_branch
        %110 = sbr.rel (%p108) target = $region16
      $region15: #{tpu_custom_call.1} parent=5 // pred_region
        // Predicated region
        $region17: #{tpu_custom_call.1} parent=15 // pred_check
          %p111 = pneg %p34
        $region18: #{tpu_custom_call.1} parent=15 // pred_check_branch
          %113 = sbr.rel (%p111) target = $region20
        $region19: #{tpu_custom_call.1} parent=15 // pred_region
          %s114 = smul.u32 8, %s14
          %p115 = scmp.lt.s32.totalorder %s114, 31
          %s116 = scalar_select %p115, %s114, 31
          %s117 = smul.addr %s116, 8
          %s118 = scalar_lea.vmem %s0, %s117
          %s119 = smul.u32 8, %s14
        $region20: #{tpu_custom_call.1} parent=15 // pred_fallthru
          _
        // Predicated region
        $region21: #{tpu_custom_call.1} parent=15 // pred_check
          %p120 = pneg %p60
        $region22: #{tpu_custom_call.1} parent=15 // pred_check_branch
          %122 = sbr.rel (%p120) target = $region24
        $region23: #{tpu_custom_call.1} parent=15 // pred_region
          %s123 = sand.u32 %s50, 1
          %s124 = scalar_lea.sflag [#allocation3], %s123
          %s125 = sand.u32 %s50, 1
          %s126 = smul.addr %s125, 8
          %s127 = scalar_lea.vmem [#allocation2], %s126
          %s129 = ssub.s32 128, 128
          %130 = vsyncadd %s124, %s129
          %s131 = smul.addr %s14, 128
          %s132 = scalar_lea.hbm %s1, %s131
          %s134 = sshll.u32 %s127, 4
          %s135 = int_to_ptr.vmem [resolvable:$true] %s134
          %137 = dma.hbm_to_vmem [thread:$0]  %s132, 128, %s135, %s124
        $region24: #{tpu_custom_call.1} parent=15 // pred_fallthru
          _
      $region16: #{tpu_custom_call.1} parent=5 // pred_fallthru
        _
      %p138 = scmp.le.s32.totalorder 1, %s14
      %p139 = scmp.lt.s32.totalorder %s14, 5
      %p140 = pnand %p138, %p139
      %p141 = pneg %p140
      // Predicated region
      $region25: #{tpu_custom_call.1} parent=5 // pred_check
        _
      $region26: #{tpu_custom_call.1} parent=5 // pred_check_branch
        %143 = sbr.rel (%p140) target = $region28
      $region27: #{tpu_custom_call.1} parent=5 // pred_region
        %s144 = ssub.s32 %s14, 1
        %s145 = sand.u32 %s53, 1
        %s146 = scalar_lea.sflag [#allocation3], %s145
        %s147 = sand.u32 %s53, 1
        %s148 = smul.addr %s147, 8
        %s149 = scalar_lea.vmem [#allocation2], %s148
        // Predicated region
        $region29: #{tpu_custom_call.1} parent=27 // pred_check
          %p150 = pneg %p66
        $region30: #{tpu_custom_call.1} parent=27 // pred_check_branch
          %152 = sbr.rel (%p150) target = $region32
        $region31: #{tpu_custom_call.1} parent=27 // pred_region
          %153 = dma.done %s146, 128
        $region32: #{tpu_custom_call.1} parent=27 // pred_fallthru
          _
        %s154 = smul.u32 8, %s19
        %p155 = scmp.lt.s32.totalorder %s154, 31
        %s156 = scalar_select %p155, %s154, 31
        %s157 = smul.addr %s156, 8
        %s158 = scalar_lea.vmem %s0, %s157
        %p159 = pneg %p40
        %p160 = pneg %p37
        %s161 = sand.u32 %s53, 1
        %s162 = scalar_lea.sflag [#allocation3], %s161
        %s163 = sand.u32 %s53, 1
        %s164 = smul.addr %s163, 8
        %s165 = scalar_lea.vmem [#allocation2], %s164
        %p166 = pneg %p66
        %p167 = pneg %p63
        %p168 = pneg %p92
        %p169 = pneg %p89
        %s170 = sand.u32 %s79, 1
        %s171 = scalar_lea.sflag [#allocation4], %s170
        %s172 = sand.u32 %s79, 1
        %s173 = smul.addr %s172, 64
        %s174 = scalar_lea.vmem [#allocation5], %s173
        %s175 = smul.u32 8, %s19
        %p176 = scmp.lt.s32.totalorder %s175, 31
        %s177 = scalar_select %p176, %s175, 31
        %s178 = smul.addr %s177, 8
        %s179 = scalar_lea.vmem %s0, %s178
        %s180 = smul.u32 8, %s19
        %s181 = smul.u32 8, %s19
        %v182 = vld [vmem:[%s149] sm:$0xff]
        %v184 = vcombine.high %v182, %v182
        %v186 = vunpack.c.l.s4 1966171168
        %v187 = vunpack.c.0.s8 %v186
        %v188 = vlaneseq
        %v189 = vshrl.u32 %v188, 7
        %v190 = vsub.s32 %v187, %v189
        %v191 = vrot.slane %v182, %v190
        %v193 = vunpack.c.l.s4 1966171168
        %v194 = vunpack.c.0.s8 %v193
        %v195 = vlaneseq
        %v196 = vshrl.u32 %v195, 7
        %v197 = vsub.s32 %v194, %v196
        %v198 = vrot.slane %v184, %v197
        %v199 = vcombine.high %v191, %v191
        %v200 = vcombine.high %v198, %v198
        %v202 = vunpack.c.l.s4 1966171168
        %v203 = vunpack.c.0.s8 %v202
        %v204 = vlaneseq
        %v205 = vshrl.u32 %v204, 7
        %v206 = vsub.s32 %v203, %v205
        %v207 = vrot.slane %v191, %v206
        %v209 = vunpack.c.l.s4 1966171168
        %v210 = vunpack.c.0.s8 %v209
        %v211 = vlaneseq
        %v212 = vshrl.u32 %v211, 7
        %v213 = vsub.s32 %v210, %v212
        %v214 = vrot.slane %v198, %v213
        %v216 = vunpack.c.l.s4 1966171168
        %v217 = vunpack.c.0.s8 %v216
        %v218 = vlaneseq
        %v219 = vshrl.u32 %v218, 7
        %v220 = vsub.s32 %v217, %v219
        %v221 = vrot.slane %v199, %v220
        %v223 = vunpack.c.l.s4 1966171168
        %v224 = vunpack.c.0.s8 %v223
        %v225 = vlaneseq
        %v226 = vshrl.u32 %v225, 7
        %v227 = vsub.s32 %v224, %v226
        %v228 = vrot.slane %v200, %v227
        %v229 = vcombine.high %v207, %v207
        %v230 = vcombine.high %v214, %v214
        %v231 = vcombine.high %v221, %v221
        %v232 = vcombine.high %v228, %v228
        %v233 = vlaneseq
        %v234 = vshrl.u32 %v233, 7
        %v235 = vsub.s32 0, %v234
        %v236 = vrot.slane %v207, %v235
        %v237 = vlaneseq
        %v238 = vshrl.u32 %v237, 7
        %v239 = vsub.s32 0, %v238
        %v240 = vrot.slane %v221, %v239
        %v241 = vlaneseq
        %v242 = vshrl.u32 %v241, 7
        %v243 = vsub.s32 0, %v242
        %v244 = vrot.slane %v229, %v243
        %v245 = vlaneseq
        %v246 = vshrl.u32 %v245, 7
        %v247 = vsub.s32 0, %v246
        %v248 = vrot.slane %v231, %v247
        %v249 = vlaneseq
        %v250 = vshrl.u32 %v249, 7
        %v251 = vsub.s32 0, %v250
        %v252 = vrot.slane %v214, %v251
        %v253 = vlaneseq
        %v254 = vshrl.u32 %v253, 7
        %v255 = vsub.s32 0, %v254
        %v256 = vrot.slane %v228, %v255
        %v257 = vlaneseq
        %v258 = vshrl.u32 %v257, 7
        %v259 = vsub.s32 0, %v258
        %v260 = vrot.slane %v230, %v259
        %v261 = vlaneseq
        %v262 = vshrl.u32 %v261, 7
        %v263 = vsub.s32 0, %v262
        %v264 = vrot.slane %v232, %v263
        %v273 = vld [vmem:[%s179] sm:$0xff]
        %v274 = vld [vmem:[%s179 + $0x8] sm:$0xff]
        %v275 = vld [vmem:[%s179 + $0x10] sm:$0xff]
        %v276 = vld [vmem:[%s179 + $0x18] sm:$0xff]
        %v277 = vld [vmem:[%s179 + $0x20] sm:$0xff]
        %v278 = vld [vmem:[%s179 + $0x28] sm:$0xff]
        %v279 = vld [vmem:[%s179 + $0x30] sm:$0xff]
        %v280 = vld [vmem:[%s179 + $0x38] sm:$0xff]
        %282 = vset.pattern.permute.xlu0 0
        %283 = vperm.xlu0 %282, %v273
        %v284 = vpop.permute.xlu0 %283
        %287 = vset.pattern.permute.xlu0 0
        %288 = vperm.xlu0 %287, %v274
        %v289 = vpop.permute.xlu0 %288
        %292 = vset.pattern.permute.xlu0 0
        %293 = vperm.xlu0 %292, %v275
        %v294 = vpop.permute.xlu0 %293
        %297 = vset.pattern.permute.xlu0 0
        %298 = vperm.xlu0 %297, %v276
        %v299 = vpop.permute.xlu0 %298
        %302 = vset.pattern.permute.xlu0 0
        %303 = vperm.xlu0 %302, %v277
        %v304 = vpop.permute.xlu0 %303
        %307 = vset.pattern.permute.xlu0 0
        %308 = vperm.xlu0 %307, %v278
        %v309 = vpop.permute.xlu0 %308
        %312 = vset.pattern.permute.xlu0 0
        %313 = vperm.xlu0 %312, %v279
        %v314 = vpop.permute.xlu0 %313
        %317 = vset.pattern.permute.xlu0 0
        %318 = vperm.xlu0 %317, %v280
        %v319 = vpop.permute.xlu0 %318
        %v321 = vadd.f32 %v284, %v236
        %v322 = vadd.f32 %v289, %v240
        %v323 = vadd.f32 %v294, %v244
        %v324 = vadd.f32 %v299, %v248
        %v325 = vadd.f32 %v304, %v252
        %v326 = vadd.f32 %v309, %v256
        %v327 = vadd.f32 %v314, %v260
        %v328 = vadd.f32 %v319, %v264
        %329 = vst [vmem:[%s174] sm:$0xff] %v321
        %330 = vst [vmem:[%s174 + $0x8] sm:$0xff] %v322
        %331 = vst [vmem:[%s174 + $0x10] sm:$0xff] %v323
        %332 = vst [vmem:[%s174 + $0x18] sm:$0xff] %v324
        %333 = vst [vmem:[%s174 + $0x20] sm:$0xff] %v325
        %334 = vst [vmem:[%s174 + $0x28] sm:$0xff] %v326
        %335 = vst [vmem:[%s174 + $0x30] sm:$0xff] %v327
        %336 = vst [vmem:[%s174 + $0x38] sm:$0xff] %v328
        %s337 = sand.u32 %s79, 1
        %s338 = scalar_lea.sflag [#allocation4], %s337
        %s339 = sand.u32 %s79, 1
        %s340 = smul.addr %s339, 64
        %s341 = scalar_lea.vmem [#allocation5], %s340
        // Predicated region
        $region33: #{tpu_custom_call.1} parent=27 // pred_check
          %p342 = pneg %p89
        $region34: #{tpu_custom_call.1} parent=27 // pred_check_branch
          %344 = sbr.rel (%p342) target = $region36
        $region35: #{tpu_custom_call.1} parent=27 // pred_region
          %s345 = smul.u32 8, %s19
          %s347 = ssub.s32 1024, 1024
          %348 = vsyncadd %s338, %s347
          %s349 = smul.addr %s345, 128
          %s350 = scalar_lea.hbm %s2, %s349
          %s351 = sshll.u32 %s341, 4
          %s352 = int_to_ptr.vmem [resolvable:$true] %s351
          %357 = dma.vmem_to_hbm [thread:$0]  %s352, 1024, %s350, %s338, 128, 128, 8
        $region36: #{tpu_custom_call.1} parent=27 // pred_fallthru
          _
      $region28: #{tpu_custom_call.1} parent=5 // pred_fallthru
        _
      %p358 = scmp.le.s32.totalorder 2, %s14
      // Predicated region
      $region37: #{tpu_custom_call.1} parent=5 // pred_check
        %p359 = pneg %p358
      $region38: #{tpu_custom_call.1} parent=5 // pred_check_branch
        %361 = sbr.rel (%p359) target = $region40
      $region39: #{tpu_custom_call.1} parent=5 // pred_region
        %s362 = ssub.s32 %s14, 2
        // Predicated region
        $region41: #{tpu_custom_call.1} parent=39 // pred_check
          %p363 = pneg %p95
        $region42: #{tpu_custom_call.1} parent=39 // pred_check_branch
          %365 = sbr.rel (%p363) target = $region44
        $region43: #{tpu_custom_call.1} parent=39 // pred_region
          %s366 = sand.u32 %s80, 1
          %s367 = scalar_lea.sflag [#allocation4], %s366
          %s368 = sand.u32 %s80, 1
          %s369 = smul.addr %s368, 64
          %s370 = scalar_lea.vmem [#allocation5], %s369
          %371 = dma.done %s367, 1024
        $region44: #{tpu_custom_call.1} parent=39 // pred_fallthru
          _
      $region40: #{tpu_custom_call.1} parent=5 // pred_fallthru
        _
    $region6: #{tpu_custom_call.1} parent=1 // loop_footer
      %s18 = sadd.s32 1, %s14
    $region7: #{tpu_custom_call.1} parent=1 // loop_footer_branch
      %13 = sbr.rel target = $region3
    $region8: #{tpu_custom_call.1} parent=1 // loop_exit
      _
    %372 = vsyncpa [#allocation3], 1
    %s373 = scalar_lea.sflag [#allocation3], 1
    %374 = vsyncpa %s373, 1
    %375 = vsyncpa [#allocation4], 1
    %s376 = scalar_lea.sflag [#allocation4], 1
    %377 = vsyncpa %s376, 1

</llo_original>
